<compile_context>
chip_gen: v5e
topology: v5e:2x2
jax: 0.10.0
libtpu: 0.0.40
codegen_flags: <defaults>
</compile_context>

<pallas_src>
import jax
import jax.numpy as jnp
from jax import lax
from jax.experimental import pallas as pl
from jax.experimental.pallas import tpu as pltpu

BN_EPS = 1e-5
LANE = 128
TS_GROUP = 8                      # centroids per group-kernel grid step (full (8,128) vregs)
# Sized against v7x's 64 MiB physical VMEM (leave headroom for double buffering).
_VMEM_LIMIT = 48 * 1024 * 1024


def _round_up(x, m):
    return ((x + m - 1) // m) * m


def _pick_tile(total, candidates):
    for c in candidates:
        if c <= total and total % c == 0:
            return c
    return total


# ----------------------------- Pallas kernels -------------------------------

def _mlp_kernel(x_ref, fc1w_ref, fc1b_ref, w1_ref, b1_ref, w2_ref, b2_ref, feat_ref):
    # x_ref: [1, TN, Cin] f32; weights pre-transposed/folded/padded, stored in bf16.
    # feat = h + relu(bn2(conv2(relu(bn1(conv1(h)))))), h = fc1(x).  Only the residual
    # features are written back (bf16): `h` is not needed in HBM (points_ori is recomputed
    # on the S sampled rows outside), halving this kernel's HBM writeback.
    x = x_ref[0].astype(jnp.bfloat16)                                     # [TN, Cin]
    h = jnp.dot(x, fc1w_ref[...], preferred_element_type=jnp.float32) + fc1b_ref[...]
    y = jnp.dot(h.astype(jnp.bfloat16), w1_ref[...],
                preferred_element_type=jnp.float32) + b1_ref[...]
    y = jnp.maximum(y, 0.0)                                               # relu(bn1(conv1))
    y = jnp.dot(y.astype(jnp.bfloat16), w2_ref[...],
                preferred_element_type=jnp.float32) + b2_ref[...]
    y = jnp.maximum(y, 0.0)                                               # relu(bn2(conv2))
    feat_ref[0] = (h + y).astype(feat_ref.dtype)                          # bf16 residual


def _sqdist_kernel(a_ref, bt_ref, out_ref):
    # a_ref: [1, TS, 3] (sampled centroids), bt_ref: [1, 3, TN] (xyz pre-transposed so the
    # point axis is already lane-dense).  Exact (a-b)^2 expansion on the VPU: no MXU, no
    # in-kernel transposes/relayouts.  out_ref: [1, TS, TN].
    a = a_ref[0]                                  # [TS, C]
    bt = bt_ref[0]                                # [C, TN]
    C = a.shape[-1]
    acc = jnp.zeros(out_ref.shape[1:], jnp.float32)
    for c in range(C):                            # C == 3: static unroll
        diff = a[:, c:c + 1] - bt[c:c + 1, :]     # [TS,1] - [1,TN] -> [TS, TN]
        acc = acc + diff * diff
    out_ref[0] = acc


def _make_group_kernel(K):
    # Fused neighbor gather + max-pool + residual + final (folded) BN.
    #   idx_ref   : SMEM [B, S_pad*K] int32 neighbor indices (whole array)
    #   ori_ref   : VMEM (TS, D)  f32  fc1 features at the sampled centroids (this S tile)
    #   scale/shift: (1, D) f32 folded final BN
    #   feat_ref  : VMEM (N_pad, D) bf16 whole per-batch residual-feature slab
    #   out_ref   : (TS, D) f32
    #   feat32_ref: VMEM (N_pad, D) f32 scratch (bf16 slab unpacked once per batch)
    def kernel(idx_ref, ori_ref, scale_ref, shift_ref, feat_ref, out_ref, feat32_ref):
        b = pl.program_id(0)
        si = pl.program_id(1)
        ts = out_ref.shape[0]

        # Unpack the bf16 slab to f32 once per batch: f32 rows are sublane-aligned, so the
        # per-neighbor dynamic row loads below are plain vector loads (no packed-row issues).
        @pl.when(si == 0)
        def _():
            feat32_ref[...] = feat_ref[...].astype(jnp.float32)

        rows = []
        for s in range(ts):                       # ts*K static-unrolled dynamic VMEM reads
            base = (si * ts + s) * K
            m = feat32_ref[pl.ds(idx_ref[b, base], 1), :]            # [1, D]
            for k in range(1, K):
                m = jnp.maximum(m, feat32_ref[pl.ds(idx_ref[b, base + k], 1), :])
            rows.append(m)
        pooled = jnp.concatenate(rows, axis=0)    # (ts, D): dense (8,128) vregs
        out_ref[...] = (ori_ref[...] + pooled) * scale_ref[...] + shift_ref[...]

    return kernel


# ----------------------------- Pallas wrappers -------------------------------

def mlp_pallas(points, fc1_wt, fc1_b, w1t, b1, w2t, b2, tn):
    B, N_pad, Cin = points.shape
    D_pad = fc1_wt.shape[1]
    wspec = lambda *shape: pl.BlockSpec(shape, lambda b, n: (0,) * len(shape))
    return pl.pallas_call(
        _mlp_kernel,
        out_shape=jax.ShapeDtypeStruct((B, N_pad, D_pad), jnp.bfloat16),
        grid=(B, N_pad // tn),
        in_specs=[
            pl.BlockSpec((1, tn, Cin), lambda b, n: (b, n, 0)),
            wspec(Cin, D_pad), wspec(1, D_pad),
            wspec(D_pad, D_pad), wspec(1, D_pad),
            wspec(D_pad, D_pad), wspec(1, D_pad),
        ],
        out_specs=pl.BlockSpec((1, tn, D_pad), lambda b, n: (b, n, 0)),
        compiler_params=pltpu.CompilerParams(
            dimension_semantics=("parallel", "parallel"),
            vmem_limit_bytes=_VMEM_LIMIT),
    )(points, fc1_wt, fc1_b, w1t, b1, w2t, b2)


def sqdist_pallas(new_xyz_p, xyz_t, ts, tn):
    B, S_pad, C = new_xyz_p.shape
    N_pad = xyz_t.shape[-1]
    return pl.pallas_call(
        _sqdist_kernel,
        out_shape=jax.ShapeDtypeStruct((B, S_pad, N_pad), jnp.float32),
        grid=(B, S_pad // ts, N_pad // tn),
        in_specs=[
            pl.BlockSpec((1, ts, C), lambda b, i, j: (b, i, 0)),
            pl.BlockSpec((1, C, tn), lambda b, i, j: (b, 0, j)),
        ],
        out_specs=pl.BlockSpec((1, ts, tn), lambda b, i, j: (b, i, j)),
        compiler_params=pltpu.CompilerParams(
            dimension_semantics=("parallel", "parallel", "parallel"),
            vmem_limit_bytes=_VMEM_LIMIT),
    )(new_xyz_p, xyz_t)


def group_pallas(idx2d, points_ori, scale, shift, feat, nneigh, ts):
    B, S_pad, D_pad = points_ori.shape
    N_pad = feat.shape[1]
    return pl.pallas_call(
        _make_group_kernel(nneigh),
        out_shape=jax.ShapeDtypeStruct((B, S_pad, D_pad), jnp.float32),
        grid=(B, S_pad // ts),
        in_specs=[
            # Neighbor indices: regular 2-D SMEM operand (not scalar-prefetched; avoids the
            # 1-D next_pow2 SMEM padding blow-up of the previous version).
            pl.BlockSpec(memory_space=pltpu.MemorySpace.SMEM),
            pl.BlockSpec((None, ts, D_pad), lambda b, si: (b, si, 0)),     # points_ori tile
            pl.BlockSpec((1, D_pad), lambda b, si: (0, 0)),                # folded BN scale
            pl.BlockSpec((1, D_pad), lambda b, si: (0, 0)),                # folded BN shift
            # Whole per-batch feature slab, VMEM-resident across all S tiles of this batch.
            pl.BlockSpec((None, N_pad, D_pad), lambda b, si: (b, 0, 0)),
        ],
        out_specs=pl.BlockSpec((None, ts, D_pad), lambda b, si: (b, si, 0)),
        scratch_shapes=[pltpu.VMEM((N_pad, D_pad), jnp.float32)],
        compiler_params=pltpu.CompilerParams(
            # si must stay "arbitrary": the once-per-batch bf16->f32 unpack at si == 0 relies
            # on in-order traversal of the S tiles.  The batch axis is split across TCs.
            dimension_semantics=("parallel", "arbitrary"),
            vmem_limit_bytes=_VMEM_LIMIT),
    )(idx2d, points_ori, scale, shift, feat)


# ----------------------------- JAX glue --------------------------------------

def farthest_point_sample(xyz, npoint):
    """Standard PointNet++ FPS (CUDA impl starts from index 0). [B,N,3] -> [B,S] int32."""
    B, N, _ = xyz.shape

    def one(xb):
        def body(i, carry):
            dist, far, idxs = carry
            idxs = idxs.at[i].set(far)
            centroid = xb[far]
            d = jnp.sum((xb - centroid) ** 2, axis=-1)
            dist = jnp.minimum(dist, d)
            far = jnp.argmax(dist).astype(jnp.int32)
            return dist, far, idxs

        init = (jnp.full((N,), 1e10, jnp.float32),
                jnp.array(0, jnp.int32),
                jnp.zeros((npoint,), jnp.int32))
        _, _, idxs = lax.fori_loop(0, npoint, body, init)
        return idxs

    return jax.vmap(one)(xyz)


def index_points(points, idx):
    """points: [B, N, C]; idx: [B, ...] -> [B, ..., C]"""
    return jax.vmap(lambda p, i: p[i])(points, idx)


def _bn_fold(params, name, eps=BN_EPS):
    s = params[f"{name}_gamma"] / jnp.sqrt(params[f"{name}_var"] + eps)
    t = params[f"{name}_beta"] - params[f"{name}_mean"] * s
    return s, t


def _prepare_weights(params, D_pad):
    """Fold eval-mode BatchNorm into the 1x1 convs, pad the feature dim to D_pad (lane
    dense), pre-transpose, and cast matmul weights to bf16 (biases/scale stay f32)."""
    D, Cin = params["fc1_w"].shape
    s1, t1 = _bn_fold(params, "bn1")
    s2, t2 = _bn_fold(params, "bn2")
    sb, tb = _bn_fold(params, "bn")

    def pad_mat(w, rows, cols):
        return jnp.zeros((rows, cols), w.dtype).at[:w.shape[0], :w.shape[1]].set(w)

    def pad_vec(v, n, fill=0.0):
        return jnp.full((n,), fill, v.dtype).at[:v.shape[0]].set(v)

    fc1_wt = pad_mat(params["fc1_w"].T, Cin, D_pad).astype(jnp.bfloat16)       # [Cin, Dp]
    fc1_b = pad_vec(params["fc1_b"], D_pad).reshape(1, D_pad)
    w1t = pad_mat((params["conv1_w"] * s1[:, None]).T, D_pad, D_pad).astype(jnp.bfloat16)
    b1 = pad_vec(params["conv1_b"] * s1 + t1, D_pad).reshape(1, D_pad)
    w2t = pad_mat((params["conv2_w"] * s2[:, None]).T, D_pad, D_pad).astype(jnp.bfloat16)
    b2 = pad_vec(params["conv2_b"] * s2 + t2, D_pad).reshape(1, D_pad)
    sbp = pad_vec(sb, D_pad, 1.0).reshape(1, D_pad)
    tbp = pad_vec(tb, D_pad, 0.0).reshape(1, D_pad)
    return fc1_wt, fc1_b, w1t, b1, w2t, b2, sbp, tbp


def pointnet_sa_forward(params, xyz, points, npoint, nneigh):
    """Mirrors PointNetSetAbstraction.forward (eval-mode BatchNorm)."""
    B, N, Cxyz = xyz.shape
    Cin = points.shape[-1]
    D = params["fc1_w"].shape[0]
    # v6e/v7x MXU is 2x256^2: pad large dims to a 256 multiple; 128 otherwise (v5e native).
    D_pad = _round_up(D, 256) if D >= 256 else _round_up(D, LANE)
    N_pad = _round_up(N, LANE)          # lane-dense point axis for the distance kernel
    S = npoint
    S_pad = _round_up(S, TS_GROUP)

    fc1_wt, fc1_b, w1t, b1, w2t, b2, sbp, tbp = _prepare_weights(params, D_pad)

    # --- FPS + gather of sampled coordinates (torch.no_grad path; JAX glue) ---
    fps_idx = farthest_point_sample(xyz, npoint)                  # [B, S]
    new_xyz = index_points(xyz, fps_idx)                          # [B, S, 3]

    # --- per-point residual MLP, N tiled (Pallas, kernel 1); bf16 feat only ---
    pts_pad = jnp.zeros((B, N_pad, Cin), jnp.float32).at[:, :N, :].set(points)
    tn_mlp = _pick_tile(N_pad, (2048, 1024, 512, 256, 128))
    feat = mlp_pallas(pts_pad, fc1_wt, fc1_b, w1t, b1, w2t, b2, tn_mlp)   # [B,Np,Dp] bf16

    # points_ori == fc1(points[fps_idx]) (fc1 is pointwise): computed exactly in f32 on just
    # the S sampled rows instead of writing all of `h` to HBM and gathering S rows from it.
    sampled = index_points(points, fps_idx)                               # [B, S, Cin]
    points_ori = sampled @ params["fc1_w"].T + params["fc1_b"]            # [B, S, D] f32
    ori_pad = jnp.zeros((B, S_pad, D_pad), jnp.float32).at[:, :S, :D].set(points_ori)

    # --- kNN: squared distances (Pallas, kernel 2) + top_k selection (JAX glue) ---
    # Padded xyz columns keep the 1e6 fill so they are never among the K nearest; top_k runs
    # directly on the padded dists (no [B,S,N] re-slice / extra HBM round trip).
    xyz_pad = jnp.full((B, N_pad, Cxyz), 1e6, jnp.float32).at[:, :N, :].set(xyz)
    xyz_t = jnp.transpose(xyz_pad, (0, 2, 1))                     # [B, 3, N_pad]
    nxyz_pad = jnp.zeros((B, S_pad, Cxyz), jnp.float32).at[:, :S, :].set(new_xyz)
    ts = _pick_tile(S_pad, (256, 128, 64, 32, 16, 8))
    tn_sq = _pick_tile(N_pad, (1024, 512, 256, 128))
    dists = sqdist_pallas(nxyz_pad, xyz_t, ts, tn_sq)             # [B, S_pad, N_pad]
    _, idx = lax.top_k(-dists, nneigh)                            # [B, S_pad, K] (K nearest)
    idx2d = idx.reshape(B, S_pad * nneigh).astype(jnp.int32)

    # --- fused gather + max-pool + residual + final BN (Pallas, kernel 3) ---
    new_points = group_pallas(idx2d, ori_pad, sbp, tbp, feat, nneigh, TS_GROUP)
    return new_xyz, new_points[:, :S, :D]


# ----------------------------- parameters ------------------------------------

def init_params(key, in_channel, dim):
    ks = jax.random.split(key, 6)

    def lin_init(k, fan_in, shape):
        bound = 1.0 / jnp.sqrt(fan_in)
        return jax.random.uniform(k, shape, jnp.float32, -bound, bound)

    params = dict(
        fc1_w=lin_init(ks[0], in_channel, (dim, in_channel)),
        fc1_b=lin_init(ks[1], in_channel, (dim,)),
        conv1_w=lin_init(ks[2], dim, (dim, dim)),
        conv1_b=lin_init(ks[3], dim, (dim,)),
        conv2_w=lin_init(ks[4], dim, (dim, dim)),
        conv2_b=lin_init(ks[5], dim, (dim,)),
    )
    # Eval-mode BatchNorm with deterministic, non-trivial stats / affine params.
    c = jnp.arange(dim, dtype=jnp.float32)
    for i, name in enumerate(("bn1", "bn2", "bn")):
        params[f"{name}_gamma"] = 1.0 + 0.01 * (i + 1) * c
        params[f"{name}_beta"] = 0.02 * c - 0.1 * i
        params[f"{name}_mean"] = 0.01 * (i + 1) * c
        params[f"{name}_var"] = 1.0 + 0.05 * c
    return params


# ----------------------------- pure-JAX f32 reference -------------------------

def reference_forward(params, xyz, points, npoint, nneigh):
    def bn(x, name):
        s, t = _bn_fold(params, name)
        return x * s + t

    fps_idx = farthest_point_sample(xyz, npoint)
    new_xyz = index_points(xyz, fps_idx)
    h = points @ params["fc1_w"].T + params["fc1_b"]
    points_ori = index_points(h, fps_idx)               # taken BEFORE the conv block
    y = jnp.maximum(bn(h @ params["conv1_w"].T + params["conv1_b"], "bn1"), 0.0)
    y = jnp.maximum(bn(y @ params["conv2_w"].T + params["conv2_b"], "bn2"), 0.0)
    feat = h + y
    d = jnp.sum((new_xyz[:, :, None, :] - xyz[:, None, :, :]) ** 2, axis=-1)
    _, idx = lax.top_k(-d, nneigh)
    grouped = index_points(feat, idx)
    new_points = bn(points_ori + jnp.max(grouped, axis=2), "bn")
    return new_xyz, new_points


# ----------------------------- main -------------------------------------------

if __name__ == "__main__":
    B, N, C_XYZ, C_IN, DIM = 2, 16, 3, 8, 32
    NPOINT, NNEIGH = 8, 4

    key = jax.random.PRNGKey(0)
    k_xyz, k_pts, k_par = jax.random.split(key, 3)
    xyz = jax.random.normal(k_xyz, (B, N, C_XYZ), dtype=jnp.float32)
    points = jax.random.normal(k_pts, (B, N, C_IN), dtype=jnp.float32)
    params = init_params(k_par, C_IN, DIM)

    new_xyz, new_points = pointnet_sa_forward(params, xyz, points, NPOINT, NNEIGH)
    jax.block_until_ready((new_xyz, new_points))

    ref_xyz, ref_points = reference_forward(params, xyz, points, NPOINT, NNEIGH)

    assert new_xyz.shape == (B, NPOINT, C_XYZ)
    assert new_points.shape == (B, NPOINT, DIM)
    assert jnp.allclose(new_xyz, ref_xyz, atol=1e-5), "new_xyz mismatch"
    # Pallas path uses bf16 MXU operands and bf16 feature storage (f32 accumulation /
    # epilogue); reference is all-f32, so a correspondingly looser tolerance is used.
    # Structural bugs produce O(1) errors.
    max_err = float(jnp.max(jnp.abs(new_points - ref_points)))
    assert jnp.allclose(new_points, ref_points, atol=5e-2, rtol=5e-2), (
        f"new_points mismatch (max abs err {max_err})")
    print("KERNEL_OK")
</pallas_src>

<mosaic_0001>
module attributes {stable_mosaic.version = 11 : i64} {
  func.func @_mlp_kernel(%arg0: i32, %arg1: i32, %arg2: memref<1x128x8xf32, #tpu.memory_space<vmem>>, %arg3: memref<8x128xbf16, #tpu.memory_space<vmem>>, %arg4: memref<1x128xf32, #tpu.memory_space<vmem>>, %arg5: memref<128x128xbf16, #tpu.memory_space<vmem>>, %arg6: memref<1x128xf32, #tpu.memory_space<vmem>>, %arg7: memref<128x128xbf16, #tpu.memory_space<vmem>>, %arg8: memref<1x128xf32, #tpu.memory_space<vmem>>, %arg9: memref<1x128x128xbf16, #tpu.memory_space<vmem>>) attributes {dimension_semantics = [#tpu.dimension_semantics<parallel>, #tpu.dimension_semantics<parallel>], iteration_bounds = array<i64: 2, 1>, scalar_prefetch = 0 : i64, scratch_operands = 0 : i64, tpu.core_type = #tpu.core_type<tc>, window_params = [{transform_indices = @transform_0, window_bounds = array<i64: 1, 128, 8>}, {pipeline_mode = #tpu.pipeline_mode<synchronous>, transform_indices = @transform_1, window_bounds = array<i64: 8, 128>}, {pipeline_mode = #tpu.pipeline_mode<synchronous>, transform_indices = @transform_2, window_bounds = array<i64: 1, 128>}, {pipeline_mode = #tpu.pipeline_mode<synchronous>, transform_indices = @transform_3, window_bounds = array<i64: 128, 128>}, {pipeline_mode = #tpu.pipeline_mode<synchronous>, transform_indices = @transform_4, window_bounds = array<i64: 1, 128>}, {pipeline_mode = #tpu.pipeline_mode<synchronous>, transform_indices = @transform_5, window_bounds = array<i64: 128, 128>}, {pipeline_mode = #tpu.pipeline_mode<synchronous>, transform_indices = @transform_6, window_bounds = array<i64: 1, 128>}, {transform_indices = @transform_7, window_bounds = array<i64: 1, 128, 128>}]} {
    %c0 = arith.constant 0 : index
    %c0_0 = arith.constant 0 : index
    %c0_1 = arith.constant 0 : index
    %0 = vector.load %arg2[%c0, %c0_0, %c0_1] : memref<1x128x8xf32, #tpu.memory_space<vmem>>, vector<1x128x8xf32>
    %1 = vector.shape_cast %0 : vector<1x128x8xf32> to vector<128x8xf32>
    %2 = arith.truncf %1 : vector<128x8xf32> to vector<128x8xbf16>
    %c0_2 = arith.constant 0 : index
    %c0_3 = arith.constant 0 : index
    %3 = vector.load %arg3[%c0_2, %c0_3] : memref<8x128xbf16, #tpu.memory_space<vmem>>, vector<8x128xbf16>
    %cst = arith.constant dense<0.000000e+00> : vector<128x128xf32>
    %4 = tpu.matmul %2, %3, %cst {dimension_numbers = #tpu.dot_dimension_numbers<[1], [0], [0], [1], [0, 0, 1, 1], [], []>} : vector<128x8xbf16>, vector<8x128xbf16>, vector<128x128xf32> -> vector<128x128xf32>
    %c0_4 = arith.constant 0 : index
    %c0_5 = arith.constant 0 : index
    %5 = vector.load %arg4[%c0_4, %c0_5] : memref<1x128xf32, #tpu.memory_space<vmem>>, vector<1x128xf32>
    %6 = vector.broadcast %5 : vector<1x128xf32> to vector<128x128xf32>
    %7 = arith.addf %4, %6 : vector<128x128xf32>
    %8 = arith.truncf %7 : vector<128x128xf32> to vector<128x128xbf16>
    %c0_6 = arith.constant 0 : index
    %c0_7 = arith.constant 0 : index
    %9 = vector.load %arg5[%c0_6, %c0_7] : memref<128x128xbf16, #tpu.memory_space<vmem>>, vector<128x128xbf16>
    %cst_8 = arith.constant dense<0.000000e+00> : vector<128x128xf32>
    %10 = tpu.matmul %8, %9, %cst_8 {dimension_numbers = #tpu.dot_dimension_numbers<[1], [0], [0], [1], [0, 0, 1, 1], [], []>} : vector<128x128xbf16>, vector<128x128xbf16>, vector<128x128xf32> -> vector<128x128xf32>
    %c0_9 = arith.constant 0 : index
    %c0_10 = arith.constant 0 : index
    %11 = vector.load %arg6[%c0_9, %c0_10] : memref<1x128xf32, #tpu.memory_space<vmem>>, vector<1x128xf32>
    %12 = vector.broadcast %11 : vector<1x128xf32> to vector<128x128xf32>
    %13 = arith.addf %10, %12 : vector<128x128xf32>
    %cst_11 = arith.constant 0.000000e+00 : f32
    %14 = vector.broadcast %cst_11 : f32 to vector<128x128xf32>
    %15 = arith.maximumf %13, %14 : vector<128x128xf32>
    %16 = arith.truncf %15 : vector<128x128xf32> to vector<128x128xbf16>
    %c0_12 = arith.constant 0 : index
    %c0_13 = arith.constant 0 : index
    %17 = vector.load %arg7[%c0_12, %c0_13] : memref<128x128xbf16, #tpu.memory_space<vmem>>, vector<128x128xbf16>
    %cst_14 = arith.constant dense<0.000000e+00> : vector<128x128xf32>
    %18 = tpu.matmul %16, %17, %cst_14 {dimension_numbers = #tpu.dot_dimension_numbers<[1], [0], [0], [1], [0, 0, 1, 1], [], []>} : vector<128x128xbf16>, vector<128x128xbf16>, vector<128x128xf32> -> vector<128x128xf32>
    %c0_15 = arith.constant 0 : index
    %c0_16 = arith.constant 0 : index
    %19 = vector.load %arg8[%c0_15, %c0_16] : memref<1x128xf32, #tpu.memory_space<vmem>>, vector<1x128xf32>
    %20 = vector.broadcast %19 : vector<1x128xf32> to vector<128x128xf32>
    %21 = arith.addf %18, %20 : vector<128x128xf32>
    %cst_17 = arith.constant 0.000000e+00 : f32
    %22 = vector.broadcast %cst_17 : f32 to vector<128x128xf32>
    %23 = arith.maximumf %21, %22 : vector<128x128xf32>
    %24 = arith.addf %7, %23 : vector<128x128xf32>
    %25 = arith.truncf %24 : vector<128x128xf32> to vector<128x128xbf16>
    %c0_18 = arith.constant 0 : index
    %c0_19 = arith.constant 0 : index
    %c0_20 = arith.constant 0 : index
    %26 = vector.load %arg9[%c0_18, %c0_19, %c0_20] : memref<1x128x128xbf16, #tpu.memory_space<vmem>>, vector<1x128x128xbf16>
    %27 = vector.shape_cast %26 : vector<1x128x128xbf16> to vector<128x128xbf16>
    %28 = vector.shape_cast %25 : vector<128x128xbf16> to vector<1x128x128xbf16>
    tpu.vector_store %arg9[%c0_18, %c0_19, %c0_20], %28 {strides = array<i32>} : memref<1x128x128xbf16, #tpu.memory_space<vmem>>, vector<1x128x128xbf16>,
    return
  }
  func.func @transform_0(%arg0: i32, %arg1: i32) -> (i32, i32, i32) {
    %c0_i32 = arith.constant 0 : i32
    %c0_i32_0 = arith.constant 0 : i32
    return %arg0, %arg1, %c0_i32 : i32, i32, i32
  }
  func.func @transform_1(%arg0: i32, %arg1: i32) -> (i32, i32) {
    %c0_i32 = arith.constant 0 : i32
    %c0_i32_0 = arith.constant 0 : i32
    %c0_i32_1 = arith.constant 0 : i32
    return %c0_i32, %c0_i32_0 : i32, i32
  }
  func.func @transform_2(%arg0: i32, %arg1: i32) -> (i32, i32) {
    %c0_i32 = arith.constant 0 : i32
    %c0_i32_0 = arith.constant 0 : i32
    %c0_i32_1 = arith.constant 0 : i32
    return %c0_i32, %c0_i32_0 : i32, i32
  }
  func.func @transform_3(%arg0: i32, %arg1: i32) -> (i32, i32) {
    %c0_i32 = arith.constant 0 : i32
    %c0_i32_0 = arith.constant 0 : i32
    %c0_i32_1 = arith.constant 0 : i32
    return %c0_i32, %c0_i32_0 : i32, i32
  }
  func.func @transform_4(%arg0: i32, %arg1: i32) -> (i32, i32) {
    %c0_i32 = arith.constant 0 : i32
    %c0_i32_0 = arith.constant 0 : i32
    %c0_i32_1 = arith.constant 0 : i32
    return %c0_i32, %c0_i32_0 : i32, i32
  }
  func.func @transform_5(%arg0: i32, %arg1: i32) -> (i32, i32) {
    %c0_i32 = arith.constant 0 : i32
    %c0_i32_0 = arith.constant 0 : i32
    %c0_i32_1 = arith.constant 0 : i32
    return %c0_i32, %c0_i32_0 : i32, i32
  }
  func.func @transform_6(%arg0: i32, %arg1: i32) -> (i32, i32) {
    %c0_i32 = arith.constant 0 : i32
    %c0_i32_0 = arith.constant 0 : i32
    %c0_i32_1 = arith.constant 0 : i32
    return %c0_i32, %c0_i32_0 : i32, i32
  }
  func.func @transform_7(%arg0: i32, %arg1: i32) -> (i32, i32, i32) {
    %c0_i32 = arith.constant 0 : i32
    %c0_i32_0 = arith.constant 0 : i32
    return %arg0, %arg1, %c0_i32 : i32, i32, i32
  }
}

</mosaic_0001>

<llo_original>
// kernel: tpu_custom_call.1
$region0: #{tpu_custom_call.1}
  #allocation0 [shape = 'u32[]', space=smem, size = 0x4, offset = 0x4, fixed_abs, tag = 'smem constant byte address 0x4 - core index']
  #allocation1 [shape = 'u32[72,128]{1,0:T(1,128)}', space=vmem, size = 0x9000, scoped, tag = 'internal scratch']
  %s0 = inlined_call_operand.vmem [shape: f32[2,128,8], index: 0, kind: input, shape index: {}]
  %s1 = inlined_call_operand.vmem [shape: bf16[8,128], index: 1, kind: input, shape index: {}]
  %s2 = inlined_call_operand.vmem [shape: f32[1,128], index: 2, kind: input, shape index: {}]
  %s3 = inlined_call_operand.vmem [shape: bf16[128,128], index: 3, kind: input, shape index: {}]
  %s4 = inlined_call_operand.vmem [shape: f32[1,128], index: 4, kind: input, shape index: {}]
  %s5 = inlined_call_operand.vmem [shape: bf16[128,128], index: 5, kind: input, shape index: {}]
  %s6 = inlined_call_operand.vmem [shape: f32[1,128], index: 6, kind: input, shape index: {}]
  %s7 = inlined_call_operand.hbm [shape: bf16[2,128,128], index: 7, kind: output, shape index: {}]
  %s8 = sld [smem:[#allocation0]]
  $region61: #{tpu_custom_call.1} parent=0
    _
  %s10 = ssub.s32 1, %s8
  %s11 = scalar_select 0, %s10, %s8
  $region1: #{tpu_custom_call.1} parent=0
    #allocation2 [shape = 'u8[65536]{0}', space=vmem, size = 0x10000, scoped, tag = 'output window, operand 0']
    #allocation3 [shape = 's32[2]{0}', space=sflag, size = 0x8, scoped, tag = 'scoped memory for tpu_custom_call.1']
    %12 = vsyncpa [#allocation3], 0
    %s13 = scalar_lea.sflag [#allocation3], 1
    %14 = vsyncpa %s13, 0
    loop: start=0, step=1, limit=4
    $region2: #{tpu_custom_call.1} parent=1 // loop_pre_header
      _
    $region3: #{tpu_custom_call.1} parent=1 // loop_header
      %s16 = sphi 0, %s20
      %p17 = scmp.ge.s32.totalorder %s16, 4
      %s23 = sphi 0, %s35
      %s24 = sphi 0, %s31
      %s25 = sphi 0, %s23
      %s26 = sphi 0, %s24
      %s27 = sphi 0, %s25
      %s28 = sphi 0, %s26
      %s40 = sphi 0, %s42
      %s43 = sphi 0, %s40
      %s44 = sphi 0, %s43
      %s60 = sphi 0, %s44
      %s64 = sphi 0, %s64
      %s66 = sphi 0, %s64
      %s67 = sphi 0, %s66
      %s81 = sphi 0, %s67
      %s85 = sphi 0, %s85
      %s87 = sphi 0, %s85
      %s88 = sphi 0, %s87
      %s102 = sphi 0, %s88
      %s106 = sphi 0, %s106
      %s108 = sphi 0, %s106
      %s109 = sphi 0, %s108
      %s123 = sphi 0, %s109
      %s127 = sphi 0, %s127
      %s129 = sphi 0, %s127
      %s130 = sphi 0, %s129
      %s144 = sphi 0, %s130
      %s148 = sphi 0, %s148
      %s150 = sphi 0, %s148
      %s151 = sphi 0, %s150
      %s165 = sphi 0, %s151
      %s169 = sphi 0, %s169
      %s171 = sphi 0, %s169
      %s172 = sphi 0, %s171
      %s186 = sphi 0, %s172
      %s194 = sphi 0, %s196
      %s197 = sphi 0, %s194
      %s198 = sphi 0, %s197
      %s214 = sphi 0, %s198
    $region4: #{tpu_custom_call.1} parent=1 // loop_header_branch
      %19 = sbr.rel (%p17) target = $region8
    $region5: #{tpu_custom_call.1} parent=1 // loop_body
      %s21 = ssub.s32 %s16, 1
      %s22 = ssub.s32 %s16, 2
      %s29 = sadd.s32 1, %s24
      %p30 = scmp.ge.s32.totalorder %s29, 1
      %s31 = scalar_select %p30, 0, %s29
      %s32 = sadd.s32 1, %s23
      %s33 = scalar_select %p30, %s32, %s23
      %p34 = scmp.ge.s32.totalorder %s33, 2
      %s35 = scalar_select %p34, 0, %s33
      %s36 = ssub.s32 %s23, %s35
      %s37 = ssub.s32 %s24, %s31
      %s38 = sor.u32 %s36, %s37
      %p39 = scmp.eq.s32.totalorder %s38, 0
      %s41 = sadd.s32 %s40, 1
      %s42 = scalar_select %p39, %s40, %s41
      %p45 = pneg %p39
      %p46 = scmp.eq.s32.totalorder %s16, 1
      %p47 = por %p45, %p46
      %p48 = scmp.ne.s32.totalorder %s40, %s43
      %p49 = scmp.eq.s32.totalorder %s16, 0
      %p50 = por %p48, %p49
      %p51 = scmp.ne.s32.totalorder %s40, %s43
      %p52 = scmp.eq.s32.totalorder %s21, 1
      %p53 = por %p51, %p52
      %p54 = scmp.ne.s32.totalorder %s43, %s44
      %p55 = scmp.eq.s32.totalorder %s21, 0
      %p56 = por %p54, %p55
      %p57 = scmp.ne.s32.totalorder %s43, %s44
      %p58 = scmp.eq.s32.totalorder %s22, 1
      %p59 = por %p57, %p58
      %p61 = scmp.ne.s32.totalorder %s44, %s60
      %p62 = scmp.eq.s32.totalorder %s22, 0
      %p63 = por %p61, %p62
      %s65 = sadd.s32 %s64, 1
      %p68 = scmp.eq.s32.totalorder %s16, 1
      %p69 = scmp.ne.s32.totalorder %s64, %s66
      %p70 = scmp.eq.s32.totalorder %s16, 0
      %p71 = por %p69, %p70
      %p72 = scmp.ne.s32.totalorder %s64, %s66
      %p73 = scmp.eq.s32.totalorder %s21, 1
      %p74 = por %p72, %p73
      %p75 = scmp.ne.s32.totalorder %s66, %s67
      %p76 = scmp.eq.s32.totalorder %s21, 0
      %p77 = por %p75, %p76
      %p78 = scmp.ne.s32.totalorder %s66, %s67
      %p79 = scmp.eq.s32.totalorder %s22, 1
      %p80 = por %p78, %p79
      %p82 = scmp.ne.s32.totalorder %s67, %s81
      %p83 = scmp.eq.s32.totalorder %s22, 0
      %p84 = por %p82, %p83
      %s86 = sadd.s32 %s85, 1
      %p89 = scmp.eq.s32.totalorder %s16, 1
      %p90 = scmp.ne.s32.totalorder %s85, %s87
      %p91 = scmp.eq.s32.totalorder %s16, 0
      %p92 = por %p90, %p91
      %p93 = scmp.ne.s32.totalorder %s85, %s87
      %p94 = scmp.eq.s32.totalorder %s21, 1
      %p95 = por %p93, %p94
      %p96 = scmp.ne.s32.totalorder %s87, %s88
      %p97 = scmp.eq.s32.totalorder %s21, 0
      %p98 = por %p96, %p97
      %p99 = scmp.ne.s32.totalorder %s87, %s88
      %p100 = scmp.eq.s32.totalorder %s22, 1
      %p101 = por %p99, %p100
      %p103 = scmp.ne.s32.totalorder %s88, %s102
      %p104 = scmp.eq.s32.totalorder %s22, 0
      %p105 = por %p103, %p104
      %s107 = sadd.s32 %s106, 1
      %p110 = scmp.eq.s32.totalorder %s16, 1
      %p111 = scmp.ne.s32.totalorder %s106, %s108
      %p112 = scmp.eq.s32.totalorder %s16, 0
      %p113 = por %p111, %p112
      %p114 = scmp.ne.s32.totalorder %s106, %s108
      %p115 = scmp.eq.s32.totalorder %s21, 1
      %p116 = por %p114, %p115
      %p117 = scmp.ne.s32.totalorder %s108, %s109
      %p118 = scmp.eq.s32.totalorder %s21, 0
      %p119 = por %p117, %p118
      %p120 = scmp.ne.s32.totalorder %s108, %s109
      %p121 = scmp.eq.s32.totalorder %s22, 1
      %p122 = por %p120, %p121
      %p124 = scmp.ne.s32.totalorder %s109, %s123
      %p125 = scmp.eq.s32.totalorder %s22, 0
      %p126 = por %p124, %p125
      %s128 = sadd.s32 %s127, 1
      %p131 = scmp.eq.s32.totalorder %s16, 1
      %p132 = scmp.ne.s32.totalorder %s127, %s129
      %p133 = scmp.eq.s32.totalorder %s16, 0
      %p134 = por %p132, %p133
      %p135 = scmp.ne.s32.totalorder %s127, %s129
      %p136 = scmp.eq.s32.totalorder %s21, 1
      %p137 = por %p135, %p136
      %p138 = scmp.ne.s32.totalorder %s129, %s130
      %p139 = scmp.eq.s32.totalorder %s21, 0
      %p140 = por %p138, %p139
      %p141 = scmp.ne.s32.totalorder %s129, %s130
      %p142 = scmp.eq.s32.totalorder %s22, 1
      %p143 = por %p141, %p142
      %p145 = scmp.ne.s32.totalorder %s130, %s144
      %p146 = scmp.eq.s32.totalorder %s22, 0
      %p147 = por %p145, %p146
      %s149 = sadd.s32 %s148, 1
      %p152 = scmp.eq.s32.totalorder %s16, 1
      %p153 = scmp.ne.s32.totalorder %s148, %s150
      %p154 = scmp.eq.s32.totalorder %s16, 0
      %p155 = por %p153, %p154
      %p156 = scmp.ne.s32.totalorder %s148, %s150
      %p157 = scmp.eq.s32.totalorder %s21, 1
      %p158 = por %p156, %p157
      %p159 = scmp.ne.s32.totalorder %s150, %s151
      %p160 = scmp.eq.s32.totalorder %s21, 0
      %p161 = por %p159, %p160
      %p162 = scmp.ne.s32.totalorder %s150, %s151
      %p163 = scmp.eq.s32.totalorder %s22, 1
      %p164 = por %p162, %p163
      %p166 = scmp.ne.s32.totalorder %s151, %s165
      %p167 = scmp.eq.s32.totalorder %s22, 0
      %p168 = por %p166, %p167
      %s170 = sadd.s32 %s169, 1
      %p173 = scmp.eq.s32.totalorder %s16, 1
      %p174 = scmp.ne.s32.totalorder %s169, %s171
      %p175 = scmp.eq.s32.totalorder %s16, 0
      %p176 = por %p174, %p175
      %p177 = scmp.ne.s32.totalorder %s169, %s171
      %p178 = scmp.eq.s32.totalorder %s21, 1
      %p179 = por %p177, %p178
      %p180 = scmp.ne.s32.totalorder %s171, %s172
      %p181 = scmp.eq.s32.totalorder %s21, 0
      %p182 = por %p180, %p181
      %p183 = scmp.ne.s32.totalorder %s171, %s172
      %p184 = scmp.eq.s32.totalorder %s22, 1
      %p185 = por %p183, %p184
      %p187 = scmp.ne.s32.totalorder %s172, %s186
      %p188 = scmp.eq.s32.totalorder %s22, 0
      %p189 = por %p187, %p188
      %s190 = ssub.s32 %s23, %s35
      %s191 = ssub.s32 %s24, %s31
      %s192 = sor.u32 %s190, %s191
      %p193 = scmp.eq.s32.totalorder %s192, 0
      %s195 = sadd.s32 %s194, 1
      %s196 = scalar_select %p193, %s194, %s195
      %p199 = pneg %p193
      %p200 = scmp.eq.s32.totalorder %s16, 1
      %p201 = por %p199, %p200
      %p202 = scmp.ne.s32.totalorder %s194, %s197
      %p203 = scmp.eq.s32.totalorder %s16, 0
      %p204 = por %p202, %p203
      %p205 = scmp.ne.s32.totalorder %s194, %s197
      %p206 = scmp.eq.s32.totalorder %s21, 1
      %p207 = por %p205, %p206
      %p208 = scmp.ne.s32.totalorder %s197, %s198
      %p209 = scmp.eq.s32.totalorder %s21, 0
      %p210 = por %p208, %p209
      %p211 = scmp.ne.s32.totalorder %s197, %s198
      %p212 = scmp.eq.s32.totalorder %s22, 1
      %p213 = por %p211, %p212
      %p215 = scmp.ne.s32.totalorder %s198, %s214
      %p216 = scmp.eq.s32.totalorder %s22, 0
      %p217 = por %p215, %p216
      %p218 = scmp.le.s32.totalorder 1, %s16
      %p219 = scmp.lt.s32.totalorder %s16, 3
      %p220 = pnand %p218, %p219
      %p221 = pneg %p220
      // Predicated region
      $region9: #{tpu_custom_call.1} parent=5 // pred_check
        _
      $region10: #{tpu_custom_call.1} parent=5 // pred_check_branch
        %223 = sbr.rel (%p220) target = $region12
      $region11: #{tpu_custom_call.1} parent=5 // pred_region
        %s224 = ssub.s32 %s16, 1
        // Predicated region
        $region13: #{tpu_custom_call.1} parent=11 // pred_check
          %p225 = pneg %p77
        $region14: #{tpu_custom_call.1} parent=11 // pred_check_branch
          %227 = sbr.rel (%p225) target = $region16
        $region15: #{tpu_custom_call.1} parent=11 // pred_region
          _
        $region16: #{tpu_custom_call.1} parent=11 // pred_fallthru
          _
        // Predicated region
        $region17: #{tpu_custom_call.1} parent=11 // pred_check
          %p228 = pneg %p98
        $region18: #{tpu_custom_call.1} parent=11 // pred_check_branch
          %230 = sbr.rel (%p228) target = $region20
        $region19: #{tpu_custom_call.1} parent=11 // pred_region
          _
        $region20: #{tpu_custom_call.1} parent=11 // pred_fallthru
          _
        // Predicated region
        $region21: #{tpu_custom_call.1} parent=11 // pred_check
          %p231 = pneg %p119
        $region22: #{tpu_custom_call.1} parent=11 // pred_check_branch
          %233 = sbr.rel (%p231) target = $region24
        $region23: #{tpu_custom_call.1} parent=11 // pred_region
          _
        $region24: #{tpu_custom_call.1} parent=11 // pred_fallthru
          _
        // Predicated region
        $region25: #{tpu_custom_call.1} parent=11 // pred_check
          %p234 = pneg %p140
        $region26: #{tpu_custom_call.1} parent=11 // pred_check_branch
          %236 = sbr.rel (%p234) target = $region28
        $region27: #{tpu_custom_call.1} parent=11 // pred_region
          _
        $region28: #{tpu_custom_call.1} parent=11 // pred_fallthru
          _
        // Predicated region
        $region29: #{tpu_custom_call.1} parent=11 // pred_check
          %p237 = pneg %p161
        $region30: #{tpu_custom_call.1} parent=11 // pred_check_branch
          %239 = sbr.rel (%p237) target = $region32
        $region31: #{tpu_custom_call.1} parent=11 // pred_region
          _
        $region32: #{tpu_custom_call.1} parent=11 // pred_fallthru
          _
        // Predicated region
        $region33: #{tpu_custom_call.1} parent=11 // pred_check
          %p240 = pneg %p182
        $region34: #{tpu_custom_call.1} parent=11 // pred_check_branch
          %242 = sbr.rel (%p240) target = $region36
        $region35: #{tpu_custom_call.1} parent=11 // pred_region
          _
        $region36: #{tpu_custom_call.1} parent=11 // pred_fallthru
          _
      $region12: #{tpu_custom_call.1} parent=5 // pred_fallthru
        _
      %p243 = scmp.lt.s32.totalorder %s16, 2
      // Predicated region
      $region37: #{tpu_custom_call.1} parent=5 // pred_check
        %p244 = pneg %p243
      $region38: #{tpu_custom_call.1} parent=5 // pred_check_branch
        %246 = sbr.rel (%p244) target = $region40
      $region39: #{tpu_custom_call.1} parent=5 // pred_region
        // Predicated region
        $region41: #{tpu_custom_call.1} parent=39 // pred_check
          %p247 = pneg %p50
        $region42: #{tpu_custom_call.1} parent=39 // pred_check_branch
          %249 = sbr.rel (%p247) target = $region44
        $region43: #{tpu_custom_call.1} parent=39 // pred_region
          %s250 = smul.u32 16, %s24
          %p251 = scmp.lt.s32.totalorder %s23, 1
          %s252 = scalar_select %p251, %s23, 1
          %p253 = scmp.lt.s32.totalorder %s250, 15
          %s254 = scalar_select %p253, %s250, 15
          %s255 = smul.addr %s252, 16
          %s256 = sadd.s32 %s254, %s255
          %s257 = smul.addr %s256, 8
          %s258 = scalar_lea.vmem %s0, %s257
          %s259 = smul.u32 16, %s24
        $region44: #{tpu_custom_call.1} parent=39 // pred_fallthru
          _
      $region40: #{tpu_custom_call.1} parent=5 // pred_fallthru
        _
      %p260 = scmp.le.s32.totalorder 1, %s16
      %p261 = scmp.lt.s32.totalorder %s16, 3
      %p262 = pnand %p260, %p261
      %p263 = pneg %p262
      // Predicated region
      $region45: #{tpu_custom_call.1} parent=5 // pred_check
        _
      $region46: #{tpu_custom_call.1} parent=5 // pred_check_branch
        %265 = sbr.rel (%p262) target = $region48
      $region47: #{tpu_custom_call.1} parent=5 // pred_region
        %s266 = ssub.s32 %s16, 1
        %s267 = smul.u32 16, %s26
        %p268 = scmp.lt.s32.totalorder %s25, 1
        %s269 = scalar_select %p268, %s25, 1
        %p270 = scmp.lt.s32.totalorder %s267, 15
        %s271 = scalar_select %p270, %s267, 15
        %s272 = smul.addr %s269, 16
        %s273 = sadd.s32 %s271, %s272
        %s274 = smul.addr %s273, 8
        %s275 = scalar_lea.vmem %s0, %s274
        %p276 = pneg %p56
        %p277 = pneg %p53
        %p278 = pneg %p77
        %p279 = pneg %p74
        %p280 = pneg %p98
        %p281 = pneg %p95
        %p282 = pneg %p119
        %p283 = pneg %p116
        %p284 = pneg %p140
        %p285 = pneg %p137
        %p286 = pneg %p161
        %p287 = pneg %p158
        %p288 = pneg %p182
        %p289 = pneg %p179
        %p290 = pneg %p210
        %p291 = pneg %p207
        %s292 = sand.u32 %s197, 1
        %s293 = scalar_lea.sflag [#allocation3], %s292
        %s294 = sand.u32 %s197, 1
        %s295 = smul.addr %s294, 64
        %s296 = scalar_lea.vmem [#allocation2], %s295
        %s297 = smul.u32 16, %s26
        %p298 = scmp.lt.s32.totalorder %s25, 1
        %s299 = scalar_select %p298, %s25, 1
        %p300 = scmp.lt.s32.totalorder %s297, 15
        %s301 = scalar_select %p300, %s297, 15
        %s302 = smul.addr %s299, 16
        %s303 = sadd.s32 %s301, %s302
        %s304 = smul.addr %s303, 8
        %s305 = scalar_lea.vmem %s0, %s304
        %s306 = smul.u32 16, %s26
        %s307 = smul.u32 16, %s26
        %v309 = vld [vmem:[%s305] sm:$0xff]
        %v310 = vld [vmem:[%s305 + $0x8] sm:$0xff]
        %v311 = vld [vmem:[%s305 + $0x10] sm:$0xff]
        %v312 = vld [vmem:[%s305 + $0x18] sm:$0xff]
        %v313 = vld [vmem:[%s305 + $0x20] sm:$0xff]
        %v314 = vld [vmem:[%s305 + $0x28] sm:$0xff]
        %v315 = vld [vmem:[%s305 + $0x30] sm:$0xff]
        %v316 = vld [vmem:[%s305 + $0x38] sm:$0xff]
        %v317 = vld [vmem:[%s305 + $0x40] sm:$0xff]
        %v318 = vld [vmem:[%s305 + $0x48] sm:$0xff]
        %v319 = vld [vmem:[%s305 + $0x50] sm:$0xff]
        %v320 = vld [vmem:[%s305 + $0x58] sm:$0xff]
        %v321 = vld [vmem:[%s305 + $0x60] sm:$0xff]
        %v322 = vld [vmem:[%s305 + $0x68] sm:$0xff]
        %v323 = vld [vmem:[%s305 + $0x70] sm:$0xff]
        %v324 = vld [vmem:[%s305 + $0x78] sm:$0xff]
        %v325 = vpack.c.bf16 %v310, %v309
        %v326 = vpack.c.bf16 %v312, %v311
        %v327 = vpack.c.bf16 %v314, %v313
        %v328 = vpack.c.bf16 %v316, %v315
        %v329 = vpack.c.bf16 %v318, %v317
        %v330 = vpack.c.bf16 %v320, %v319
        %v331 = vpack.c.bf16 %v322, %v321
        %v332 = vpack.c.bf16 %v324, %v323
        %v333 = vld [vmem:[%s1] sm:$0xf]
        %v334 = vld [vmem:[%s2] sm:$0x1]
        %v336 = vperm.slane %v334, 0
        %vm338 = vcmask 64512
        %v340 = vsel %vm338, %v325, 0
        %v343 = vsel %vm338, %v326, 0
        %v346 = vsel %vm338, %v327, 0
        %v349 = vsel %vm338, %v328, 0
        %v352 = vsel %vm338, %v329, 0
        %v355 = vsel %vm338, %v330, 0
        %v358 = vsel %vm338, %v331, 0
        %v361 = vsel %vm338, %v332, 0
        %vm363 = vcmask 1043456
        %v365 = vsel %vm363, %v333, 0
        %367 = vmatpush.bf16.msra.mxu0 0
        %368 = vmatpush.bf16.msra.mxu0 0
        %369 = vmatpush.bf16.msra.mxu0 0
        %370 = vmatpush.bf16.msra.mxu0 0
        %371 = vmatpush.bf16.msra.mxu0 0
        %372 = vmatpush.bf16.msra.mxu0 0
        %373 = vmatpush.bf16.msra.mxu0 0
        %374 = vmatpush.bf16.msra.mxu0 %v365
        %375 = vmatmul.bf16.gmra.mxu0 %v340
        %v376 = vpop.f32.mrf.mxu0
        %v377 = vadd.f32 %v336, %v376
        %v378 = vpop.f32.mrf.mxu0
        %v379 = vadd.f32 %v336, %v378
        %380 = vmatmul.bf16.gmra.mxu0 %v343
        %v381 = vpop.f32.mrf.mxu0
        %v382 = vadd.f32 %v336, %v381
        %v383 = vpop.f32.mrf.mxu0
        %v384 = vadd.f32 %v336, %v383
        %385 = vmatmul.bf16.gmra.mxu0 %v346
        %v386 = vpop.f32.mrf.mxu0
        %v387 = vadd.f32 %v336, %v386
        %v388 = vpop.f32.mrf.mxu0
        %v389 = vadd.f32 %v336, %v388
        %390 = vmatmul.bf16.gmra.mxu0 %v349
        %v391 = vpop.f32.mrf.mxu0
        %v392 = vadd.f32 %v336, %v391
        %v393 = vpop.f32.mrf.mxu0
        %v394 = vadd.f32 %v336, %v393
        %395 = vmatmul.bf16.gmra.mxu0 %v352
        %v396 = vpop.f32.mrf.mxu0
        %v397 = vadd.f32 %v336, %v396
        %v398 = vpop.f32.mrf.mxu0
        %v399 = vadd.f32 %v336, %v398
        %400 = vmatmul.bf16.gmra.mxu0 %v355
        %v401 = vpop.f32.mrf.mxu0
        %v402 = vadd.f32 %v336, %v401
        %v403 = vpop.f32.mrf.mxu0
        %v404 = vadd.f32 %v336, %v403
        %405 = vmatmul.bf16.gmra.mxu0 %v358
        %v406 = vpop.f32.mrf.mxu0
        %v407 = vadd.f32 %v336, %v406
        %v408 = vpop.f32.mrf.mxu0
        %v409 = vadd.f32 %v336, %v408
        %410 = vmatmul.bf16.gmra.mxu0 %v361
        %v411 = vpop.f32.mrf.mxu0
        %v412 = vadd.f32 %v336, %v411
        %v413 = vpop.f32.mrf.mxu0
        %v414 = vadd.f32 %v336, %v413
        %415 = vdwg.mxu0
        %v416 = vpack.c.bf16 %v379, %v377
        %v417 = vpack.c.bf16 %v384, %v382
        %v418 = vpack.c.bf16 %v389, %v387
        %v419 = vpack.c.bf16 %v394, %v392
        %v420 = vpack.c.bf16 %v399, %v397
        %v421 = vpack.c.bf16 %v404, %v402
        %v422 = vpack.c.bf16 %v409, %v407
        %v423 = vpack.c.bf16 %v414, %v412
        %v424 = vld [vmem:[%s3] sm:$0xf]
        %v425 = vld [vmem:[%s3 + $0x4] sm:$0xf]
        %v426 = vld [vmem:[%s3 + $0x8] sm:$0xf]
        %v427 = vld [vmem:[%s3 + $0xc] sm:$0xf]
        %v428 = vld [vmem:[%s3 + $0x10] sm:$0xf]
        %v429 = vld [vmem:[%s3 + $0x14] sm:$0xf]
        %v430 = vld [vmem:[%s3 + $0x18] sm:$0xf]
        %v431 = vld [vmem:[%s3 + $0x1c] sm:$0xf]
        %v432 = vld [vmem:[%s3 + $0x20] sm:$0xf]
        %v433 = vld [vmem:[%s3 + $0x24] sm:$0xf]
        %v434 = vld [vmem:[%s3 + $0x28] sm:$0xf]
        %v435 = vld [vmem:[%s3 + $0x2c] sm:$0xf]
        %v436 = vld [vmem:[%s3 + $0x30] sm:$0xf]
        %v437 = vld [vmem:[%s3 + $0x34] sm:$0xf]
        %v438 = vld [vmem:[%s3 + $0x38] sm:$0xf]
        %v439 = vld [vmem:[%s3 + $0x3c] sm:$0xf]
        %v440 = vld [vmem:[%s4] sm:$0x1]
        %v442 = vperm.slane %v440, 0
        %v460 = vunpack.c.l.b16 %v424
        %v461 = vunpack.c.l.b16 %v425
        %v462 = vunpack.c.l.b16 %v426
        %v463 = vunpack.c.l.b16 %v427
        %v464 = vunpack.c.l.b16 %v428
        %v465 = vunpack.c.l.b16 %v429
        %v466 = vunpack.c.l.b16 %v430
        %v467 = vunpack.c.l.b16 %v431
        %v468 = vunpack.c.l.b16 %v432
        %v469 = vunpack.c.l.b16 %v433
        %v470 = vunpack.c.l.b16 %v434
        %v471 = vunpack.c.l.b16 %v435
        %v472 = vunpack.c.l.b16 %v436
        %v473 = vunpack.c.l.b16 %v437
        %v474 = vunpack.c.l.b16 %v438
        %v475 = vunpack.c.l.b16 %v439
        %v476 = vpack.c.b16 %v461, %v460
        %v477 = vpack.c.b16 %v463, %v462
        %v478 = vpack.c.b16 %v465, %v464
        %v479 = vpack.c.b16 %v467, %v466
        %v480 = vpack.c.b16 %v469, %v468
        %v481 = vpack.c.b16 %v471, %v470
        %v482 = vpack.c.b16 %v473, %v472
        %v483 = vpack.c.b16 %v475, %v474
        %492 = vmatpush.bf16.msra.mxu0 %v483
        %493 = vmatpush.bf16.msra.mxu0 %v482
        %494 = vmatpush.bf16.msra.mxu0 %v481
        %495 = vmatpush.bf16.msra.mxu0 %v480
        %496 = vmatpush.bf16.msra.mxu0 %v479
        %497 = vmatpush.bf16.msra.mxu0 %v478
        %498 = vmatpush.bf16.msra.mxu0 %v477
        %499 = vmatpush.bf16.msra.mxu0 %v476
        %500 = vmatmul.bf16.gmra.mxu0 %v416
        %v501 = vpop.f32.mrf.mxu0
        %v502 = vadd.f32 %v442, %v501
        %v503 = vpop.f32.mrf.mxu0
        %v504 = vadd.f32 %v442, %v503
        %505 = vmatmul.bf16.gmra.mxu0 %v417
        %v506 = vpop.f32.mrf.mxu0
        %v507 = vadd.f32 %v442, %v506
        %v508 = vpop.f32.mrf.mxu0
        %v509 = vadd.f32 %v442, %v508
        %510 = vmatmul.bf16.gmra.mxu0 %v418
        %v511 = vpop.f32.mrf.mxu0
        %v512 = vadd.f32 %v442, %v511
        %v513 = vpop.f32.mrf.mxu0
        %v514 = vadd.f32 %v442, %v513
        %515 = vmatmul.bf16.gmra.mxu0 %v419
        %v516 = vpop.f32.mrf.mxu0
        %v517 = vadd.f32 %v442, %v516
        %v518 = vpop.f32.mrf.mxu0
        %v519 = vadd.f32 %v442, %v518
        %520 = vmatmul.bf16.gmra.mxu0 %v420
        %v521 = vpop.f32.mrf.mxu0
        %v522 = vadd.f32 %v442, %v521
        %v523 = vpop.f32.mrf.mxu0
        %v524 = vadd.f32 %v442, %v523
        %525 = vmatmul.bf16.gmra.mxu0 %v421
        %v526 = vpop.f32.mrf.mxu0
        %v527 = vadd.f32 %v442, %v526
        %v528 = vpop.f32.mrf.mxu0
        %v529 = vadd.f32 %v442, %v528
        %530 = vmatmul.bf16.gmra.mxu0 %v422
        %v531 = vpop.f32.mrf.mxu0
        %v532 = vadd.f32 %v442, %v531
        %v533 = vpop.f32.mrf.mxu0
        %v534 = vadd.f32 %v442, %v533
        %535 = vmatmul.bf16.gmra.mxu0 %v423
        %v536 = vpop.f32.mrf.mxu0
        %v537 = vadd.f32 %v442, %v536
        %v538 = vpop.f32.mrf.mxu0
        %v539 = vadd.f32 %v442, %v538
        %540 = vdwg.mxu0
        %v541 = vmax.f32 %v502, 0.0
        %v542 = vmax.f32 %v504, 0.0
        %v543 = vmax.f32 %v507, 0.0
        %v544 = vmax.f32 %v509, 0.0
        %v545 = vmax.f32 %v512, 0.0
        %v546 = vmax.f32 %v514, 0.0
        %v547 = vmax.f32 %v517, 0.0
        %v548 = vmax.f32 %v519, 0.0
        %v549 = vmax.f32 %v522, 0.0
        %v550 = vmax.f32 %v524, 0.0
        %v551 = vmax.f32 %v527, 0.0
        %v552 = vmax.f32 %v529, 0.0
        %v553 = vmax.f32 %v532, 0.0
        %v554 = vmax.f32 %v534, 0.0
        %v555 = vmax.f32 %v537, 0.0
        %v556 = vmax.f32 %v539, 0.0
        %v557 = vpack.c.bf16 %v542, %v541
        %v558 = vpack.c.bf16 %v544, %v543
        %v559 = vpack.c.bf16 %v546, %v545
        %v560 = vpack.c.bf16 %v548, %v547
        %v561 = vpack.c.bf16 %v550, %v549
        %v562 = vpack.c.bf16 %v552, %v551
        %v563 = vpack.c.bf16 %v554, %v553
        %v564 = vpack.c.bf16 %v556, %v555
        %v565 = vld [vmem:[%s5] sm:$0xf]
        %v566 = vld [vmem:[%s5 + $0x4] sm:$0xf]
        %v567 = vld [vmem:[%s5 + $0x8] sm:$0xf]
        %v568 = vld [vmem:[%s5 + $0xc] sm:$0xf]
        %v569 = vld [vmem:[%s5 + $0x10] sm:$0xf]
        %v570 = vld [vmem:[%s5 + $0x14] sm:$0xf]
        %v571 = vld [vmem:[%s5 + $0x18] sm:$0xf]
        %v572 = vld [vmem:[%s5 + $0x1c] sm:$0xf]
        %v573 = vld [vmem:[%s5 + $0x20] sm:$0xf]
        %v574 = vld [vmem:[%s5 + $0x24] sm:$0xf]
        %v575 = vld [vmem:[%s5 + $0x28] sm:$0xf]
        %v576 = vld [vmem:[%s5 + $0x2c] sm:$0xf]
        %v577 = vld [vmem:[%s5 + $0x30] sm:$0xf]
        %v578 = vld [vmem:[%s5 + $0x34] sm:$0xf]
        %v579 = vld [vmem:[%s5 + $0x38] sm:$0xf]
        %v580 = vld [vmem:[%s5 + $0x3c] sm:$0xf]
        %v581 = vld [vmem:[%s6] sm:$0x1]
        %v583 = vperm.slane %v581, 0
        %v601 = vunpack.c.l.b16 %v565
        %v602 = vunpack.c.l.b16 %v566
        %v603 = vunpack.c.l.b16 %v567
        %v604 = vunpack.c.l.b16 %v568
        %v605 = vunpack.c.l.b16 %v569
        %v606 = vunpack.c.l.b16 %v570
        %v607 = vunpack.c.l.b16 %v571
        %v608 = vunpack.c.l.b16 %v572
        %v609 = vunpack.c.l.b16 %v573
        %v610 = vunpack.c.l.b16 %v574
        %v611 = vunpack.c.l.b16 %v575
        %v612 = vunpack.c.l.b16 %v576
        %v613 = vunpack.c.l.b16 %v577
        %v614 = vunpack.c.l.b16 %v578
        %v615 = vunpack.c.l.b16 %v579
        %v616 = vunpack.c.l.b16 %v580
        %v617 = vpack.c.b16 %v602, %v601
        %v618 = vpack.c.b16 %v604, %v603
        %v619 = vpack.c.b16 %v606, %v605
        %v620 = vpack.c.b16 %v608, %v607
        %v621 = vpack.c.b16 %v610, %v609
        %v622 = vpack.c.b16 %v612, %v611
        %v623 = vpack.c.b16 %v614, %v613
        %v624 = vpack.c.b16 %v616, %v615
        %633 = vmatpush.bf16.msra.mxu0 %v624
        %634 = vmatpush.bf16.msra.mxu0 %v623
        %635 = vmatpush.bf16.msra.mxu0 %v622
        %636 = vmatpush.bf16.msra.mxu0 %v621
        %637 = vmatpush.bf16.msra.mxu0 %v620
        %638 = vmatpush.bf16.msra.mxu0 %v619
        %639 = vmatpush.bf16.msra.mxu0 %v618
        %640 = vmatpush.bf16.msra.mxu0 %v617
        %641 = vmatmul.bf16.gmra.mxu0 %v557
        %v642 = vpop.f32.mrf.mxu0
        %v643 = vadd.f32 %v583, %v642
        %v644 = vpop.f32.mrf.mxu0
        %v645 = vadd.f32 %v583, %v644
        %646 = vmatmul.bf16.gmra.mxu0 %v558
        %v647 = vpop.f32.mrf.mxu0
        %v648 = vadd.f32 %v583, %v647
        %v649 = vpop.f32.mrf.mxu0
        %v650 = vadd.f32 %v583, %v649
        %651 = vmatmul.bf16.gmra.mxu0 %v559
        %v652 = vpop.f32.mrf.mxu0
        %v653 = vadd.f32 %v583, %v652
        %v654 = vpop.f32.mrf.mxu0
        %v655 = vadd.f32 %v583, %v654
        %656 = vmatmul.bf16.gmra.mxu0 %v560
        %v657 = vpop.f32.mrf.mxu0
        %v658 = vadd.f32 %v583, %v657
        %v659 = vpop.f32.mrf.mxu0
        %v660 = vadd.f32 %v583, %v659
        %661 = vmatmul.bf16.gmra.mxu0 %v561
        %v662 = vpop.f32.mrf.mxu0
        %v663 = vadd.f32 %v583, %v662
        %v664 = vpop.f32.mrf.mxu0
        %v665 = vadd.f32 %v583, %v664
        %666 = vmatmul.bf16.gmra.mxu0 %v562
        %v667 = vpop.f32.mrf.mxu0
        %v668 = vadd.f32 %v583, %v667
        %v669 = vpop.f32.mrf.mxu0
        %v670 = vadd.f32 %v583, %v669
        %671 = vmatmul.bf16.gmra.mxu0 %v563
        %v672 = vpop.f32.mrf.mxu0
        %v673 = vadd.f32 %v583, %v672
        %v674 = vpop.f32.mrf.mxu0
        %v675 = vadd.f32 %v583, %v674
        %676 = vmatmul.bf16.gmra.mxu0 %v564
        %v677 = vpop.f32.mrf.mxu0
        %v678 = vadd.f32 %v583, %v677
        %v679 = vpop.f32.mrf.mxu0
        %v680 = vadd.f32 %v583, %v679
        %681 = vdwg.mxu0
        %v682 = vmax.f32 %v643, 0.0
        %v683 = vmax.f32 %v645, 0.0
        %v684 = vmax.f32 %v648, 0.0
        %v685 = vmax.f32 %v650, 0.0
        %v686 = vmax.f32 %v653, 0.0
        %v687 = vmax.f32 %v655, 0.0
        %v688 = vmax.f32 %v658, 0.0
        %v689 = vmax.f32 %v660, 0.0
        %v690 = vmax.f32 %v663, 0.0
        %v691 = vmax.f32 %v665, 0.0
        %v692 = vmax.f32 %v668, 0.0
        %v693 = vmax.f32 %v670, 0.0
        %v694 = vmax.f32 %v673, 0.0
        %v695 = vmax.f32 %v675, 0.0
        %v696 = vmax.f32 %v678, 0.0
        %v697 = vmax.f32 %v680, 0.0
        %v698 = vadd.f32 %v377, %v682
        %v699 = vadd.f32 %v379, %v683
        %v700 = vadd.f32 %v382, %v684
        %v701 = vadd.f32 %v384, %v685
        %v702 = vadd.f32 %v387, %v686
        %v703 = vadd.f32 %v389, %v687
        %v704 = vadd.f32 %v392, %v688
        %v705 = vadd.f32 %v394, %v689
        %v706 = vadd.f32 %v397, %v690
        %v707 = vadd.f32 %v399, %v691
        %v708 = vadd.f32 %v402, %v692
        %v709 = vadd.f32 %v404, %v693
        %v710 = vadd.f32 %v407, %v694
        %v711 = vadd.f32 %v409, %v695
        %v712 = vadd.f32 %v412, %v696
        %v713 = vadd.f32 %v414, %v697
        %v714 = vpack.c.bf16 %v698, %v698
        %v715 = vpack.c.bf16 %v699, %v699
        %v716 = vpack.c.bf16 %v700, %v700
        %v717 = vpack.c.bf16 %v701, %v701
        %v718 = vpack.c.bf16 %v702, %v702
        %v719 = vpack.c.bf16 %v703, %v703
        %v720 = vpack.c.bf16 %v704, %v704
        %v721 = vpack.c.bf16 %v705, %v705
        %v722 = vpack.c.bf16 %v706, %v706
        %v723 = vpack.c.bf16 %v707, %v707
        %v724 = vpack.c.bf16 %v708, %v708
        %v725 = vpack.c.bf16 %v709, %v709
        %v726 = vpack.c.bf16 %v710, %v710
        %v727 = vpack.c.bf16 %v711, %v711
        %v728 = vpack.c.bf16 %v712, %v712
        %v729 = vpack.c.bf16 %v713, %v713
        %730 = vst [vmem:[%s296] sm:$0xf] %v714
        %731 = vst [vmem:[%s296 + $0x4] sm:$0xf] %v715
        %732 = vst [vmem:[%s296 + $0x8] sm:$0xf] %v716
        %733 = vst [vmem:[%s296 + $0xc] sm:$0xf] %v717
        %734 = vst [vmem:[%s296 + $0x10] sm:$0xf] %v718
        %735 = vst [vmem:[%s296 + $0x14] sm:$0xf] %v719
        %736 = vst [vmem:[%s296 + $0x18] sm:$0xf] %v720
        %737 = vst [vmem:[%s296 + $0x1c] sm:$0xf] %v721
        %738 = vst [vmem:[%s296 + $0x20] sm:$0xf] %v722
        %739 = vst [vmem:[%s296 + $0x24] sm:$0xf] %v723
        %740 = vst [vmem:[%s296 + $0x28] sm:$0xf] %v724
        %741 = vst [vmem:[%s296 + $0x2c] sm:$0xf] %v725
        %742 = vst [vmem:[%s296 + $0x30] sm:$0xf] %v726
        %743 = vst [vmem:[%s296 + $0x34] sm:$0xf] %v727
        %744 = vst [vmem:[%s296 + $0x38] sm:$0xf] %v728
        %745 = vst [vmem:[%s296 + $0x3c] sm:$0xf] %v729
        %s746 = sand.u32 %s197, 1
        %s747 = scalar_lea.sflag [#allocation3], %s746
        %s748 = sand.u32 %s197, 1
        %s749 = smul.addr %s748, 64
        %s750 = scalar_lea.vmem [#allocation2], %s749
        // Predicated region
        $region49: #{tpu_custom_call.1} parent=47 // pred_check
          %p751 = pneg %p207
        $region50: #{tpu_custom_call.1} parent=47 // pred_check_branch
          %753 = sbr.rel (%p751) target = $region52
        $region51: #{tpu_custom_call.1} parent=47 // pred_region
          %s754 = smul.u32 16, %s26
          %756 = vsyncadd %s747, 0
          %s757 = smul.addr %s25, 16
          %s758 = sadd.s32 %s754, %s757
          %s759 = smul.addr %s758, 4
          %s760 = scalar_lea.hbm %s7, %s759
          %s761 = sshll.u32 %s750, 4
          %s762 = int_to_ptr.vmem [resolvable:$true] %s761
          %s763 = sshll.u32 %s760, 4
          %s764 = int_to_ptr.hbm [resolvable:$true] %s763
          %769 = dma.vmem_to_hbm [thread:$0]  %s762, 1024, %s764, %s747, 64, 64, 4
        $region52: #{tpu_custom_call.1} parent=47 // pred_fallthru
          _
      $region48: #{tpu_custom_call.1} parent=5 // pred_fallthru
        _
      %p770 = scmp.le.s32.totalorder 2, %s16
      // Predicated region
      $region53: #{tpu_custom_call.1} parent=5 // pred_check
        %p771 = pneg %p770
      $region54: #{tpu_custom_call.1} parent=5 // pred_check_branch
        %773 = sbr.rel (%p771) target = $region56
      $region55: #{tpu_custom_call.1} parent=5 // pred_region
        %s774 = ssub.s32 %s16, 2
        // Predicated region
        $region57: #{tpu_custom_call.1} parent=55 // pred_check
          %p775 = pneg %p213
        $region58: #{tpu_custom_call.1} parent=55 // pred_check_branch
          %777 = sbr.rel (%p775) target = $region60
        $region59: #{tpu_custom_call.1} parent=55 // pred_region
          %s778 = sand.u32 %s198, 1
          %s779 = scalar_lea.sflag [#allocation3], %s778
          %s780 = sand.u32 %s198, 1
          %s781 = smul.addr %s780, 64
          %s782 = scalar_lea.vmem [#allocation2], %s781
          %784 = dma.done %s779, 1024
        $region60: #{tpu_custom_call.1} parent=55 // pred_fallthru
          _
      $region56: #{tpu_custom_call.1} parent=5 // pred_fallthru
        _
    $region6: #{tpu_custom_call.1} parent=1 // loop_footer
      %s20 = sadd.s32 1, %s16
    $region7: #{tpu_custom_call.1} parent=1 // loop_footer_branch
      %15 = sbr.rel target = $region3
    $region8: #{tpu_custom_call.1} parent=1 // loop_exit
      _
    %785 = vsyncpa [#allocation3], 1
    %s786 = scalar_lea.sflag [#allocation3], 1
    %787 = vsyncpa %s786, 1

</llo_original>
